<compile_context>
chip_gen: v6e
topology: v6e:2x2x1
jax: 0.10.0
libtpu: 0.0.40
codegen_flags: <defaults>
</compile_context>

<pallas_src>
import functools

import jax
import jax.numpy as jnp
import numpy as np
from jax.experimental import pallas as pl
from jax.experimental.pallas import tpu as pltpu


# --------------------------------------------------------------------------
# hardware / capability probes
# --------------------------------------------------------------------------
@functools.lru_cache(maxsize=None)
def _physical_vmem_bytes():
    """Physical VMEM per core (conservative 64 MiB fallback, v7x-sized)."""
    try:
        info = pltpu.get_tpu_info()
        v = getattr(info, "vmem_capacity_bytes", None)
        if v:
            return int(v)
    except Exception:  # noqa: BLE001 - any query failure -> conservative value
        pass
    return 64 * 1024 * 1024


@functools.lru_cache(maxsize=None)
def _roll_mode():
    """Probe pltpu.roll once.

    Returns +1 if pltpu.roll matches np.roll (positive shift moves elements
    toward higher indices), -1 if it rotates the opposite way, 0 if the op is
    unusable (then the tap stack falls back to concat-based shifts).
    """
    try:
        def kern(x_ref, o_ref):
            o_ref[...] = pltpu.roll(x_ref[...], 1, 1)

        base = jnp.arange(128, dtype=jnp.float32).astype(jnp.bfloat16)
        x = jnp.tile(base[None, :], (16, 1))
        y = pl.pallas_call(
            kern, out_shape=jax.ShapeDtypeStruct((16, 128), jnp.bfloat16))(x)
        row = np.asarray(jax.block_until_ready(y)).astype(np.float32)[0]
        if row[0] == 127.0 and row[1] == 0.0 and row[2] == 1.0:
            return 1
        if row[0] == 1.0 and row[1] == 2.0:
            return -1
    except Exception:  # noqa: BLE001 - lowering/runtime problem -> fallback
        pass
    return 0


# --------------------------------------------------------------------------
# kernel body
# --------------------------------------------------------------------------
def _tap_stack(a, k, d, L, col_mod, roll_mode):
    """Stack k causally-shifted dilated views of (C, cols) -> (k*C, cols).

    Columns are whole samples of length L laid side by side; `col_mod` is the
    within-sample column index, so masking with (col_mod >= shift) both builds
    the causal zero prefix and stops shifts leaking across sample boundaries.
    """
    c, cols = a.shape
    zero = jnp.zeros_like(a)
    parts = []
    for t in range(k):
        s = (k - 1 - t) * d
        if s == 0:
            parts.append(a)
            continue
        if s >= L:
            parts.append(zero)
            continue
        if roll_mode != 0 and cols % 128 == 0:
            # XLU lane rotate (direction fixed by the probe); wrapped lanes
            # land only where the mask zeroes them.
            amt = s if roll_mode > 0 else cols - s
            shifted = pltpu.roll(a, amt, 1)
        else:
            shifted = jnp.concatenate(
                [jnp.zeros((c, s), a.dtype), a[:, :cols - s]], axis=1)
        parts.append(jnp.where(col_mod >= s, shifted, zero))
    return jnp.concatenate(parts, axis=0)


def _segment_kernel(x_ref, *rest, layers, L, nb, roll_mode):
    """Run `layers` fused TemporalBlocks on one (C, cols) column tile."""
    o_ref = rest[-1]
    wrefs = rest[:-1]

    # Within-sample column index, built once and reused by every tap/layer.
    lane = jax.lax.broadcasted_iota(jnp.int32, (1, L), 1)
    col_mod = jnp.concatenate([lane] * nb, axis=1) if nb > 1 else lane

    a = x_ref[...]
    for li, (k, d, c_in, c_out, has_proj) in enumerate(layers):
        w1 = wrefs[4 * li][...]      # (c_out or 2*c_out, k*c_in) bf16
        b1 = wrefs[4 * li + 1][...]  # matching rows, f32
        w2 = wrefs[4 * li + 2][...]  # (c_out, k*c_out) bf16
        b2 = wrefs[4 * li + 3][...]  # (c_out, 1) f32

        a_bf = a.astype(jnp.bfloat16)
        xs = _tap_stack(a_bf, k, d, L, col_mod, roll_mode)
        # conv1 (+ fused 1x1 downsample rows when has_proj): one MXU matmul.
        z = jnp.dot(w1, xs, preferred_element_type=jnp.float32) + b1
        if has_proj:
            h1 = jnp.maximum(z[:c_out], 0.0)
            res = z[c_out:]
        else:
            h1 = jnp.maximum(z, 0.0)
            res = a_bf.astype(jnp.float32)
        # TODO(synk): dropout (stochastic) -> inference-mode identity.
        hs = _tap_stack(h1.astype(jnp.bfloat16), k, d, L, col_mod, roll_mode)
        h2 = jnp.maximum(
            jnp.dot(w2, hs, preferred_element_type=jnp.float32) + b2, 0.0)
        a = jnp.maximum(h2 + res, 0.0)

    o_ref[...] = a.astype(o_ref.dtype)


# --------------------------------------------------------------------------
# host-side planning + pallas_call wrapper
# --------------------------------------------------------------------------
def _choose_nb(N, L):
    """Samples per column tile: smallest divisor of N with a 128-lane-aligned
    tile width (lane-dense stores, no halo); else the whole batch."""
    for nb in range(1, N + 1):
        if N % nb == 0 and (nb * L) % 128 == 0:
            return nb
    return N


def _estimate_vmem_bytes(seg, cols, in_bytes=4, out_bytes=4):
    """Per-grid-step VMEM working set: double-buffered I/O blocks, weights,
    and the largest single layer's in-register temporaries."""
    c_in0 = seg[0]['c_in']
    c_out_last = seg[-1]['c_out']
    total = 2 * c_in0 * cols * in_bytes + 2 * c_out_last * cols * out_bytes
    for p in seg:
        total += 2 * (int(p['w1'].size) * 2 + int(p['b1'].size) * 4
                      + int(p['w2'].size) * 2 + int(p['b2'].size) * 4)
    temps = 0
    for p in seg:
        k, ci, co = p['kernel'], p['c_in'], p['c_out']
        r1 = 2 * co if p['has_proj'] else co
        t = (ci * cols * 4          # carried activation (f32)
             + ci * cols * 2        # bf16 copy
             + k * ci * cols * 2    # xs tap stack
             + r1 * cols * 4        # conv1 (+proj) accumulator
             + co * cols * 2        # h1 bf16
             + k * co * cols * 2    # hs tap stack
             + co * cols * 4        # h2
             + co * cols * 4        # res
             + co * cols * 4)       # layer output
        temps = max(temps, t)
    return total + temps


def _plan_segments(params, cols, budget, max_layers):
    segs, cur = [], []
    for p in params:
        trial = cur + [p]
        too_many = max_layers is not None and len(trial) > max_layers
        too_big = _estimate_vmem_bytes(trial, cols) > budget
        if cur and (too_many or too_big):
            segs.append(cur)
            cur = [p]
        else:
            cur = trial
    if cur:
        segs.append(cur)
    return segs


def _segment_call(a, seg, *, N, L, nb, out_dtype, phys_vmem):
    c_in0 = seg[0]['c_in']
    c_out_last = seg[-1]['c_out']
    cols = nb * L
    grid = (N // nb,)
    layers_meta = tuple(
        (p['kernel'], p['dilation'], p['c_in'], p['c_out'], p['has_proj'])
        for p in seg)

    in_arrays = [a]
    in_specs = [pl.BlockSpec((c_in0, cols), lambda g: (0, g))]
    w_bytes = 0
    for p in seg:
        for name in ("w1", "b1", "w2", "b2"):
            arr = p[name]
            in_arrays.append(arr)
            # TODO(synk): pipeline_mode=pl.Buffered(1) for these grid-invariant
            #             weights once verified on the target jax version.
            in_specs.append(pl.BlockSpec(arr.shape, lambda g: (0, 0)))
            w_bytes += int(arr.size) * arr.dtype.itemsize

    out_specs = pl.BlockSpec((c_out_last, cols), lambda g: (0, g))
    out_itemsize = 2 if out_dtype == jnp.bfloat16 else 4
    out_shape = jax.ShapeDtypeStruct((c_out_last, N * L), out_dtype)

    roll_mode = _roll_mode() if cols % 128 == 0 else 0
    kern = functools.partial(_segment_kernel, layers=layers_meta, L=L, nb=nb,
                             roll_mode=roll_mode)

    flops = int(sum(2 * (int(p['w1'].size) + int(p['w2'].size)) * N * L
                    for p in seg))
    bytes_accessed = (int(a.size) * a.dtype.itemsize + w_bytes
                      + c_out_last * N * L * out_itemsize)
    est = _estimate_vmem_bytes(seg, cols,
                               in_bytes=a.dtype.itemsize,
                               out_bytes=out_itemsize)
    vmem_limit = int(min(max(32 * 1024 * 1024, 1.25 * est), 0.9 * phys_vmem))

    return pl.pallas_call(
        kern,
        out_shape=out_shape,
        grid_spec=pltpu.PrefetchScalarGridSpec(
            num_scalar_prefetch=0,
            grid=grid,
            in_specs=in_specs,
            out_specs=out_specs,
        ),
        compiler_params=pltpu.CompilerParams(
            dimension_semantics=("parallel",),
            vmem_limit_bytes=vmem_limit),
        cost_estimate=pl.CostEstimate(flops=flops, transcendentals=0,
                                      bytes_accessed=bytes_accessed),
    )(*in_arrays)


def temporal_conv_net(x, params, *, max_layers_per_call=None):
    """TemporalConvNet forward. x: (N, C_in, L) f32 -> (N, C_out, L) f32."""
    N, c0, L = x.shape
    # Single layout change for the whole network: (N, C, L) -> (C, N*L).
    a = jnp.transpose(x, (1, 0, 2)).reshape(c0, N * L)

    nb = _choose_nb(N, L)
    cols = nb * L
    phys = _physical_vmem_bytes()
    budget = int(0.7 * phys)
    segments = _plan_segments(params, cols, budget, max_layers_per_call)

    for si, seg in enumerate(segments):
        last = si == len(segments) - 1
        # bf16 inter-segment activations (matmuls consume bf16 anyway);
        # final output stays f32 to match the PyTorch module.
        out_dtype = jnp.float32 if last else jnp.bfloat16
        a = _segment_call(a, seg, N=N, L=L, nb=nb, out_dtype=out_dtype,
                          phys_vmem=phys)

    c_last = params[-1]['c_out']
    return jnp.transpose(a.reshape(c_last, N, L), (1, 0, 2))


# --------------------------------------------------------------------------
# parameter init (synthetic, mirrors TemporalConvNet.__init__ shapes)
# --------------------------------------------------------------------------
def init_tcn_params(key, num_inputs, num_channels, kernel_size):
    """Conv weights are stored tap-major, (C_out, k*C_in) with C_in innermost
    per tap block (PyTorch conv weight[:, :, 0, t] -> columns [t*C_in:(t+1)*C_in]).
    For projected layers the 1x1 downsample is fused as extra rows of w1
    living in the shift==0 tap columns. bf16 weights, f32 biases."""
    params = []
    c_in = num_inputs
    for i, c_out in enumerate(num_channels):
        key, k1, k2, k3, k4, k5, k6 = jax.random.split(key, 7)
        d = 2 ** i
        w1 = 0.01 * jax.random.normal(k1, (c_out, kernel_size * c_in), jnp.float32)
        b1 = 0.01 * jax.random.normal(k2, (c_out, 1), jnp.float32)
        w2 = 0.01 * jax.random.normal(k3, (c_out, kernel_size * c_out), jnp.float32)
        b2 = 0.01 * jax.random.normal(k4, (c_out, 1), jnp.float32)
        has_proj = c_in != c_out
        if has_proj:
            wd = 0.01 * jax.random.normal(k5, (c_out, c_in), jnp.float32)
            bd = 0.01 * jax.random.normal(k6, (c_out, 1), jnp.float32)
            wdpad = jnp.zeros((c_out, kernel_size * c_in), jnp.float32)
            wdpad = wdpad.at[:, (kernel_size - 1) * c_in:].set(wd)
            w1 = jnp.concatenate([w1, wdpad], axis=0)      # (2*c_out, k*c_in)
            b1 = jnp.concatenate([b1, bd], axis=0)          # (2*c_out, 1)
        params.append(dict(
            w1=w1.astype(jnp.bfloat16), b1=b1,
            w2=w2.astype(jnp.bfloat16), b2=b2,
            kernel=kernel_size, dilation=d,
            c_in=c_in, c_out=c_out, has_proj=has_proj))
        c_in = c_out
    return params


# --------------------------------------------------------------------------
# pure-JAX reference (same bf16-operand / f32-accumulate quantization)
# --------------------------------------------------------------------------
def _ref_tcn(x, params):
    N, _, L = x.shape
    a = x
    for p in params:
        k, d, c_out = p['kernel'], p['dilation'], p['c_out']

        def taps(v):
            parts = []
            for t in range(k):
                s = (k - 1 - t) * d
                if s == 0:
                    parts.append(v)
                elif s >= L:
                    parts.append(jnp.zeros_like(v))
                else:
                    parts.append(jnp.pad(v[:, :, :L - s],
                                         ((0, 0), (0, 0), (s, 0))))
            return jnp.concatenate(parts, axis=1)           # (N, k*C, L)

        a_bf = a.astype(jnp.bfloat16)
        w1 = p['w1'].astype(jnp.float32)
        w2 = p['w2'].astype(jnp.float32)
        z = jnp.einsum('ok,nkl->nol', w1,
                       taps(a_bf).astype(jnp.float32)) + p['b1'][None]
        if p['has_proj']:
            h1 = jax.nn.relu(z[:, :c_out])
            res = z[:, c_out:]
        else:
            h1 = jax.nn.relu(z)
            res = a_bf.astype(jnp.float32)
        h2 = jax.nn.relu(
            jnp.einsum('ok,nkl->nol', w2,
                       taps(h1.astype(jnp.bfloat16)).astype(jnp.float32))
            + p['b2'][None])
        a = jax.nn.relu(h2 + res)
    return a


# --------------------------------------------------------------------------
if __name__ == "__main__":
    key = jax.random.PRNGKey(0)
    kx, kp = jax.random.split(key)

    kernel_size = 2
    num_channels = (8, 8, 8)    # layer 0: downsample 4->8; layers 1,2: identity
    params = init_tcn_params(kp, 4, num_channels, kernel_size)

    # bf16 operands + occasional bf16 rounding-boundary differences between
    # MXU and XLA f32 accumulations -> loose-ish tolerance; structural bugs
    # (wrong shift/mask/fusion) would be orders of magnitude larger.
    tol = dict(rtol=1e-2, atol=1e-2)

    # Case 1: small batch (32-lane tiles), whole network fused in one call.
    x1 = jax.random.normal(kx, (2, 4, 16), jnp.float32)
    y1 = jax.block_until_ready(temporal_conv_net(x1, params))
    np.testing.assert_allclose(np.asarray(y1), np.asarray(_ref_tcn(x1, params)), **tol)

    # Case 2: forced per-layer segmentation (exercises bf16 inter-layer HBM path).
    y2 = jax.block_until_ready(temporal_conv_net(x1, params, max_layers_per_call=1))
    np.testing.assert_allclose(np.asarray(y2), np.asarray(_ref_tcn(x1, params)), **tol)

    # Case 3: batch folded to a 128-lane tile (exercises the XLU-roll tap path
    # and the per-sample causal mask across folded samples).
    kx2, _ = jax.random.split(kx)
    x3 = jax.random.normal(kx2, (8, 4, 16), jnp.float32)
    y3 = jax.block_until_ready(temporal_conv_net(x3, params))
    np.testing.assert_allclose(np.asarray(y3), np.asarray(_ref_tcn(x3, params)), **tol)

    print("KERNEL_OK")
</pallas_src>

<mosaic_0001>
module attributes {stable_mosaic.version = 11 : i64} {
  func.func @_segment_kernel(%arg0: i32, %arg1: memref<4x32xf32, #tpu.memory_space<vmem>>, %arg2: memref<16x8xbf16, #tpu.memory_space<vmem>>, %arg3: memref<16x1xf32, #tpu.memory_space<vmem>>, %arg4: memref<8x16xbf16, #tpu.memory_space<vmem>>, %arg5: memref<8x1xf32, #tpu.memory_space<vmem>>, %arg6: memref<8x16xbf16, #tpu.memory_space<vmem>>, %arg7: memref<8x1xf32, #tpu.memory_space<vmem>>, %arg8: memref<8x16xbf16, #tpu.memory_space<vmem>>, %arg9: memref<8x1xf32, #tpu.memory_space<vmem>>, %arg10: memref<8x16xbf16, #tpu.memory_space<vmem>>, %arg11: memref<8x1xf32, #tpu.memory_space<vmem>>, %arg12: memref<8x16xbf16, #tpu.memory_space<vmem>>, %arg13: memref<8x1xf32, #tpu.memory_space<vmem>>, %arg14: memref<8x32xf32, #tpu.memory_space<vmem>>) attributes {dimension_semantics = [#tpu.dimension_semantics<parallel>], iteration_bounds = array<i64: 1>, scalar_prefetch = 0 : i64, scratch_operands = 0 : i64, tpu.core_type = #tpu.core_type<tc>, window_params = [{transform_indices = @transform_0, window_bounds = array<i64: 4, 32>}, {pipeline_mode = #tpu.pipeline_mode<synchronous>, transform_indices = @transform_1, window_bounds = array<i64: 16, 8>}, {pipeline_mode = #tpu.pipeline_mode<synchronous>, transform_indices = @transform_2, window_bounds = array<i64: 16, 1>}, {pipeline_mode = #tpu.pipeline_mode<synchronous>, transform_indices = @transform_3, window_bounds = array<i64: 8, 16>}, {pipeline_mode = #tpu.pipeline_mode<synchronous>, transform_indices = @transform_4, window_bounds = array<i64: 8, 1>}, {pipeline_mode = #tpu.pipeline_mode<synchronous>, transform_indices = @transform_5, window_bounds = array<i64: 8, 16>}, {pipeline_mode = #tpu.pipeline_mode<synchronous>, transform_indices = @transform_6, window_bounds = array<i64: 8, 1>}, {pipeline_mode = #tpu.pipeline_mode<synchronous>, transform_indices = @transform_7, window_bounds = array<i64: 8, 16>}, {pipeline_mode = #tpu.pipeline_mode<synchronous>, transform_indices = @transform_8, window_bounds = array<i64: 8, 1>}, {pipeline_mode = #tpu.pipeline_mode<synchronous>, transform_indices = @transform_9, window_bounds = array<i64: 8, 16>}, {pipeline_mode = #tpu.pipeline_mode<synchronous>, transform_indices = @transform_10, window_bounds = array<i64: 8, 1>}, {pipeline_mode = #tpu.pipeline_mode<synchronous>, transform_indices = @transform_11, window_bounds = array<i64: 8, 16>}, {pipeline_mode = #tpu.pipeline_mode<synchronous>, transform_indices = @transform_12, window_bounds = array<i64: 8, 1>}, {transform_indices = @transform_13, window_bounds = array<i64: 8, 32>}]} {
    %0 = tpu.iota {dimensions = array<i32: 1>} : vector<1x16xi32>
    %1 = tpu.concatenate %0, %0 in 1 : vector<1x16xi32>, vector<1x16xi32> -> vector<1x32xi32>
    %c0 = arith.constant 0 : index
    %c0_0 = arith.constant 0 : index
    %2 = vector.load %arg1[%c0, %c0_0] : memref<4x32xf32, #tpu.memory_space<vmem>>, vector<4x32xf32>
    %c0_1 = arith.constant 0 : index
    %c0_2 = arith.constant 0 : index
    %3 = vector.load %arg2[%c0_1, %c0_2] : memref<16x8xbf16, #tpu.memory_space<vmem>>, vector<16x8xbf16>
    %c0_3 = arith.constant 0 : index
    %c0_4 = arith.constant 0 : index
    %4 = vector.load %arg3[%c0_3, %c0_4] : memref<16x1xf32, #tpu.memory_space<vmem>>, vector<16x1xf32>
    %c0_5 = arith.constant 0 : index
    %c0_6 = arith.constant 0 : index
    %5 = vector.load %arg4[%c0_5, %c0_6] : memref<8x16xbf16, #tpu.memory_space<vmem>>, vector<8x16xbf16>
    %c0_7 = arith.constant 0 : index
    %c0_8 = arith.constant 0 : index
    %6 = vector.load %arg5[%c0_7, %c0_8] : memref<8x1xf32, #tpu.memory_space<vmem>>, vector<8x1xf32>
    %7 = arith.truncf %2 : vector<4x32xf32> to vector<4x32xbf16>
    %cst = arith.constant 0.000000e+00 : bf16
    %8 = vector.broadcast %cst : bf16 to vector<4x32xbf16>
    %cst_9 = arith.constant 0.000000e+00 : bf16
    %9 = vector.broadcast %cst_9 : bf16 to vector<4x1xbf16>
    %10 = vector.extract_strided_slice %7 {offsets = [0, 0], sizes = [4, 31], strides = [1, 1]} : vector<4x32xbf16> to vector<4x31xbf16>
    %11 = tpu.concatenate %9, %10 in 1 : vector<4x1xbf16>, vector<4x31xbf16> -> vector<4x32xbf16>
    %c1_i32 = arith.constant 1 : i32
    %12 = vector.broadcast %c1_i32 : i32 to vector<1x32xi32>
    %13 = arith.cmpi sge, %1, %12 : vector<1x32xi32>
    %14 = vector.shape_cast %13 : vector<1x32xi1> to vector<1x32xi1>
    %15 = vector.broadcast %14 : vector<1x32xi1> to vector<4x32xi1>
    %16 = arith.select %15, %11, %8 : vector<4x32xi1>, vector<4x32xbf16>
    %17 = tpu.concatenate %16, %7 in 0 : vector<4x32xbf16>, vector<4x32xbf16> -> vector<8x32xbf16>
    %cst_10 = arith.constant dense<0.000000e+00> : vector<16x32xf32>
    %18 = tpu.matmul %3, %17, %cst_10 {dimension_numbers = #tpu.dot_dimension_numbers<[1], [0], [0], [1], [0, 0, 1, 1], [], []>} : vector<16x8xbf16>, vector<8x32xbf16>, vector<16x32xf32> -> vector<16x32xf32>
    %19 = vector.broadcast %4 : vector<16x1xf32> to vector<16x32xf32>
    %20 = arith.addf %18, %19 : vector<16x32xf32>
    %21 = vector.extract_strided_slice %20 {offsets = [0, 0], sizes = [8, 32], strides = [1, 1]} : vector<16x32xf32> to vector<8x32xf32>
    %cst_11 = arith.constant 0.000000e+00 : f32
    %22 = vector.broadcast %cst_11 : f32 to vector<8x32xf32>
    %23 = arith.maximumf %21, %22 : vector<8x32xf32>
    %24 = vector.extract_strided_slice %20 {offsets = [8, 0], sizes = [8, 32], strides = [1, 1]} : vector<16x32xf32> to vector<8x32xf32>
    %25 = arith.truncf %23 : vector<8x32xf32> to vector<8x32xbf16>
    %cst_12 = arith.constant 0.000000e+00 : bf16
    %26 = vector.broadcast %cst_12 : bf16 to vector<8x32xbf16>
    %cst_13 = arith.constant 0.000000e+00 : bf16
    %27 = vector.broadcast %cst_13 : bf16 to vector<8x1xbf16>
    %28 = vector.extract_strided_slice %25 {offsets = [0, 0], sizes = [8, 31], strides = [1, 1]} : vector<8x32xbf16> to vector<8x31xbf16>
    %29 = tpu.concatenate %27, %28 in 1 : vector<8x1xbf16>, vector<8x31xbf16> -> vector<8x32xbf16>
    %c1_i32_14 = arith.constant 1 : i32
    %30 = vector.broadcast %c1_i32_14 : i32 to vector<1x32xi32>
    %31 = arith.cmpi sge, %1, %30 : vector<1x32xi32>
    %32 = vector.shape_cast %31 : vector<1x32xi1> to vector<1x32xi1>
    %33 = vector.broadcast %32 : vector<1x32xi1> to vector<8x32xi1>
    %34 = arith.select %33, %29, %26 : vector<8x32xi1>, vector<8x32xbf16>
    %35 = tpu.concatenate %34, %25 in 0 : vector<8x32xbf16>, vector<8x32xbf16> -> vector<16x32xbf16>
    %cst_15 = arith.constant dense<0.000000e+00> : vector<8x32xf32>
    %36 = tpu.matmul %5, %35, %cst_15 {dimension_numbers = #tpu.dot_dimension_numbers<[1], [0], [0], [1], [0, 0, 1, 1], [], []>} : vector<8x16xbf16>, vector<16x32xbf16>, vector<8x32xf32> -> vector<8x32xf32>
    %37 = vector.broadcast %6 : vector<8x1xf32> to vector<8x32xf32>
    %38 = arith.addf %36, %37 : vector<8x32xf32>
    %cst_16 = arith.constant 0.000000e+00 : f32
    %39 = vector.broadcast %cst_16 : f32 to vector<8x32xf32>
    %40 = arith.maximumf %38, %39 : vector<8x32xf32>
    %41 = arith.addf %40, %24 : vector<8x32xf32>
    %cst_17 = arith.constant 0.000000e+00 : f32
    %42 = vector.broadcast %cst_17 : f32 to vector<8x32xf32>
    %43 = arith.maximumf %41, %42 : vector<8x32xf32>
    %c0_18 = arith.constant 0 : index
    %c0_19 = arith.constant 0 : index
    %44 = vector.load %arg6[%c0_18, %c0_19] : memref<8x16xbf16, #tpu.memory_space<vmem>>, vector<8x16xbf16>
    %c0_20 = arith.constant 0 : index
    %c0_21 = arith.constant 0 : index
    %45 = vector.load %arg7[%c0_20, %c0_21] : memref<8x1xf32, #tpu.memory_space<vmem>>, vector<8x1xf32>
    %c0_22 = arith.constant 0 : index
    %c0_23 = arith.constant 0 : index
    %46 = vector.load %arg8[%c0_22, %c0_23] : memref<8x16xbf16, #tpu.memory_space<vmem>>, vector<8x16xbf16>
    %c0_24 = arith.constant 0 : index
    %c0_25 = arith.constant 0 : index
    %47 = vector.load %arg9[%c0_24, %c0_25] : memref<8x1xf32, #tpu.memory_space<vmem>>, vector<8x1xf32>
    %48 = arith.truncf %43 : vector<8x32xf32> to vector<8x32xbf16>
    %cst_26 = arith.constant 0.000000e+00 : bf16
    %49 = vector.broadcast %cst_26 : bf16 to vector<8x32xbf16>
    %cst_27 = arith.constant 0.000000e+00 : bf16
    %50 = vector.broadcast %cst_27 : bf16 to vector<8x2xbf16>
    %51 = vector.extract_strided_slice %48 {offsets = [0, 0], sizes = [8, 30], strides = [1, 1]} : vector<8x32xbf16> to vector<8x30xbf16>
    %52 = tpu.concatenate %50, %51 in 1 : vector<8x2xbf16>, vector<8x30xbf16> -> vector<8x32xbf16>
    %c2_i32 = arith.constant 2 : i32
    %53 = vector.broadcast %c2_i32 : i32 to vector<1x32xi32>
    %54 = arith.cmpi sge, %1, %53 : vector<1x32xi32>
    %55 = vector.shape_cast %54 : vector<1x32xi1> to vector<1x32xi1>
    %56 = vector.broadcast %55 : vector<1x32xi1> to vector<8x32xi1>
    %57 = arith.select %56, %52, %49 : vector<8x32xi1>, vector<8x32xbf16>
    %58 = tpu.concatenate %57, %48 in 0 : vector<8x32xbf16>, vector<8x32xbf16> -> vector<16x32xbf16>
    %cst_28 = arith.constant dense<0.000000e+00> : vector<8x32xf32>
    %59 = tpu.matmul %44, %58, %cst_28 {dimension_numbers = #tpu.dot_dimension_numbers<[1], [0], [0], [1], [0, 0, 1, 1], [], []>} : vector<8x16xbf16>, vector<16x32xbf16>, vector<8x32xf32> -> vector<8x32xf32>
    %60 = vector.broadcast %45 : vector<8x1xf32> to vector<8x32xf32>
    %61 = arith.addf %59, %60 : vector<8x32xf32>
    %cst_29 = arith.constant 0.000000e+00 : f32
    %62 = vector.broadcast %cst_29 : f32 to vector<8x32xf32>
    %63 = arith.maximumf %61, %62 : vector<8x32xf32>
    %64 = arith.extf %48 : vector<8x32xbf16> to vector<8x32xf32>
    %65 = arith.truncf %63 : vector<8x32xf32> to vector<8x32xbf16>
    %cst_30 = arith.constant 0.000000e+00 : bf16
    %66 = vector.broadcast %cst_30 : bf16 to vector<8x32xbf16>
    %cst_31 = arith.constant 0.000000e+00 : bf16
    %67 = vector.broadcast %cst_31 : bf16 to vector<8x2xbf16>
    %68 = vector.extract_strided_slice %65 {offsets = [0, 0], sizes = [8, 30], strides = [1, 1]} : vector<8x32xbf16> to vector<8x30xbf16>
    %69 = tpu.concatenate %67, %68 in 1 : vector<8x2xbf16>, vector<8x30xbf16> -> vector<8x32xbf16>
    %c2_i32_32 = arith.constant 2 : i32
    %70 = vector.broadcast %c2_i32_32 : i32 to vector<1x32xi32>
    %71 = arith.cmpi sge, %1, %70 : vector<1x32xi32>
    %72 = vector.shape_cast %71 : vector<1x32xi1> to vector<1x32xi1>
    %73 = vector.broadcast %72 : vector<1x32xi1> to vector<8x32xi1>
    %74 = arith.select %73, %69, %66 : vector<8x32xi1>, vector<8x32xbf16>
    %75 = tpu.concatenate %74, %65 in 0 : vector<8x32xbf16>, vector<8x32xbf16> -> vector<16x32xbf16>
    %cst_33 = arith.constant dense<0.000000e+00> : vector<8x32xf32>
    %76 = tpu.matmul %46, %75, %cst_33 {dimension_numbers = #tpu.dot_dimension_numbers<[1], [0], [0], [1], [0, 0, 1, 1], [], []>} : vector<8x16xbf16>, vector<16x32xbf16>, vector<8x32xf32> -> vector<8x32xf32>
    %77 = vector.broadcast %47 : vector<8x1xf32> to vector<8x32xf32>
    %78 = arith.addf %76, %77 : vector<8x32xf32>
    %cst_34 = arith.constant 0.000000e+00 : f32
    %79 = vector.broadcast %cst_34 : f32 to vector<8x32xf32>
    %80 = arith.maximumf %78, %79 : vector<8x32xf32>
    %81 = arith.addf %80, %64 : vector<8x32xf32>
    %cst_35 = arith.constant 0.000000e+00 : f32
    %82 = vector.broadcast %cst_35 : f32 to vector<8x32xf32>
    %83 = arith.maximumf %81, %82 : vector<8x32xf32>
    %c0_36 = arith.constant 0 : index
    %c0_37 = arith.constant 0 : index
    %84 = vector.load %arg10[%c0_36, %c0_37] : memref<8x16xbf16, #tpu.memory_space<vmem>>, vector<8x16xbf16>
    %c0_38 = arith.constant 0 : index
    %c0_39 = arith.constant 0 : index
    %85 = vector.load %arg11[%c0_38, %c0_39] : memref<8x1xf32, #tpu.memory_space<vmem>>, vector<8x1xf32>
    %c0_40 = arith.constant 0 : index
    %c0_41 = arith.constant 0 : index
    %86 = vector.load %arg12[%c0_40, %c0_41] : memref<8x16xbf16, #tpu.memory_space<vmem>>, vector<8x16xbf16>
    %c0_42 = arith.constant 0 : index
    %c0_43 = arith.constant 0 : index
    %87 = vector.load %arg13[%c0_42, %c0_43] : memref<8x1xf32, #tpu.memory_space<vmem>>, vector<8x1xf32>
    %88 = arith.truncf %83 : vector<8x32xf32> to vector<8x32xbf16>
    %cst_44 = arith.constant 0.000000e+00 : bf16
    %89 = vector.broadcast %cst_44 : bf16 to vector<8x32xbf16>
    %cst_45 = arith.constant 0.000000e+00 : bf16
    %90 = vector.broadcast %cst_45 : bf16 to vector<8x4xbf16>
    %91 = vector.extract_strided_slice %88 {offsets = [0, 0], sizes = [8, 28], strides = [1, 1]} : vector<8x32xbf16> to vector<8x28xbf16>
    %92 = tpu.concatenate %90, %91 in 1 : vector<8x4xbf16>, vector<8x28xbf16> -> vector<8x32xbf16>
    %c4_i32 = arith.constant 4 : i32
    %93 = vector.broadcast %c4_i32 : i32 to vector<1x32xi32>
    %94 = arith.cmpi sge, %1, %93 : vector<1x32xi32>
    %95 = vector.shape_cast %94 : vector<1x32xi1> to vector<1x32xi1>
    %96 = vector.broadcast %95 : vector<1x32xi1> to vector<8x32xi1>
    %97 = arith.select %96, %92, %89 : vector<8x32xi1>, vector<8x32xbf16>
    %98 = tpu.concatenate %97, %88 in 0 : vector<8x32xbf16>, vector<8x32xbf16> -> vector<16x32xbf16>
    %cst_46 = arith.constant dense<0.000000e+00> : vector<8x32xf32>
    %99 = tpu.matmul %84, %98, %cst_46 {dimension_numbers = #tpu.dot_dimension_numbers<[1], [0], [0], [1], [0, 0, 1, 1], [], []>} : vector<8x16xbf16>, vector<16x32xbf16>, vector<8x32xf32> -> vector<8x32xf32>
    %100 = vector.broadcast %85 : vector<8x1xf32> to vector<8x32xf32>
    %101 = arith.addf %99, %100 : vector<8x32xf32>
    %cst_47 = arith.constant 0.000000e+00 : f32
    %102 = vector.broadcast %cst_47 : f32 to vector<8x32xf32>
    %103 = arith.maximumf %101, %102 : vector<8x32xf32>
    %104 = arith.extf %88 : vector<8x32xbf16> to vector<8x32xf32>
    %105 = arith.truncf %103 : vector<8x32xf32> to vector<8x32xbf16>
    %cst_48 = arith.constant 0.000000e+00 : bf16
    %106 = vector.broadcast %cst_48 : bf16 to vector<8x32xbf16>
    %cst_49 = arith.constant 0.000000e+00 : bf16
    %107 = vector.broadcast %cst_49 : bf16 to vector<8x4xbf16>
    %108 = vector.extract_strided_slice %105 {offsets = [0, 0], sizes = [8, 28], strides = [1, 1]} : vector<8x32xbf16> to vector<8x28xbf16>
    %109 = tpu.concatenate %107, %108 in 1 : vector<8x4xbf16>, vector<8x28xbf16> -> vector<8x32xbf16>
    %c4_i32_50 = arith.constant 4 : i32
    %110 = vector.broadcast %c4_i32_50 : i32 to vector<1x32xi32>
    %111 = arith.cmpi sge, %1, %110 : vector<1x32xi32>
    %112 = vector.shape_cast %111 : vector<1x32xi1> to vector<1x32xi1>
    %113 = vector.broadcast %112 : vector<1x32xi1> to vector<8x32xi1>
    %114 = arith.select %113, %109, %106 : vector<8x32xi1>, vector<8x32xbf16>
    %115 = tpu.concatenate %114, %105 in 0 : vector<8x32xbf16>, vector<8x32xbf16> -> vector<16x32xbf16>
    %cst_51 = arith.constant dense<0.000000e+00> : vector<8x32xf32>
    %116 = tpu.matmul %86, %115, %cst_51 {dimension_numbers = #tpu.dot_dimension_numbers<[1], [0], [0], [1], [0, 0, 1, 1], [], []>} : vector<8x16xbf16>, vector<16x32xbf16>, vector<8x32xf32> -> vector<8x32xf32>
    %117 = vector.broadcast %87 : vector<8x1xf32> to vector<8x32xf32>
    %118 = arith.addf %116, %117 : vector<8x32xf32>
    %cst_52 = arith.constant 0.000000e+00 : f32
    %119 = vector.broadcast %cst_52 : f32 to vector<8x32xf32>
    %120 = arith.maximumf %118, %119 : vector<8x32xf32>
    %121 = arith.addf %120, %104 : vector<8x32xf32>
    %cst_53 = arith.constant 0.000000e+00 : f32
    %122 = vector.broadcast %cst_53 : f32 to vector<8x32xf32>
    %123 = arith.maximumf %121, %122 : vector<8x32xf32>
    %c0_54 = arith.constant 0 : index
    %c0_55 = arith.constant 0 : index
    %124 = vector.load %arg14[%c0_54, %c0_55] : memref<8x32xf32, #tpu.memory_space<vmem>>, vector<8x32xf32>
    tpu.vector_store %arg14[%c0_54, %c0_55], %123 {strides = array<i32>} : memref<8x32xf32, #tpu.memory_space<vmem>>, vector<8x32xf32>,
    return
  }
  func.func @transform_0(%arg0: i32) -> (i32, i32) {
    %c0_i32 = arith.constant 0 : i32
    %c0_i32_0 = arith.constant 0 : i32
    return %c0_i32, %arg0 : i32, i32
  }
  func.func @transform_1(%arg0: i32) -> (i32, i32) {
    %c0_i32 = arith.constant 0 : i32
    %c0_i32_0 = arith.constant 0 : i32
    %c0_i32_1 = arith.constant 0 : i32
    return %c0_i32, %c0_i32_0 : i32, i32
  }
  func.func @transform_2(%arg0: i32) -> (i32, i32) {
    %c0_i32 = arith.constant 0 : i32
    %c0_i32_0 = arith.constant 0 : i32
    %c0_i32_1 = arith.constant 0 : i32
    return %c0_i32, %c0_i32_0 : i32, i32
  }
  func.func @transform_3(%arg0: i32) -> (i32, i32) {
    %c0_i32 = arith.constant 0 : i32
    %c0_i32_0 = arith.constant 0 : i32
    %c0_i32_1 = arith.constant 0 : i32
    return %c0_i32, %c0_i32_0 : i32, i32
  }
  func.func @transform_4(%arg0: i32) -> (i32, i32) {
    %c0_i32 = arith.constant 0 : i32
    %c0_i32_0 = arith.constant 0 : i32
    %c0_i32_1 = arith.constant 0 : i32
    return %c0_i32, %c0_i32_0 : i32, i32
  }
  func.func @transform_5(%arg0: i32) -> (i32, i32) {
    %c0_i32 = arith.constant 0 : i32
    %c0_i32_0 = arith.constant 0 : i32
    %c0_i32_1 = arith.constant 0 : i32
    return %c0_i32, %c0_i32_0 : i32, i32
  }
  func.func @transform_6(%arg0: i32) -> (i32, i32) {
    %c0_i32 = arith.constant 0 : i32
    %c0_i32_0 = arith.constant 0 : i32
    %c0_i32_1 = arith.constant 0 : i32
    return %c0_i32, %c0_i32_0 : i32, i32
  }
  func.func @transform_7(%arg0: i32) -> (i32, i32) {
    %c0_i32 = arith.constant 0 : i32
    %c0_i32_0 = arith.constant 0 : i32
    %c0_i32_1 = arith.constant 0 : i32
    return %c0_i32, %c0_i32_0 : i32, i32
  }
  func.func @transform_8(%arg0: i32) -> (i32, i32) {
    %c0_i32 = arith.constant 0 : i32
    %c0_i32_0 = arith.constant 0 : i32
    %c0_i32_1 = arith.constant 0 : i32
    return %c0_i32, %c0_i32_0 : i32, i32
  }
  func.func @transform_9(%arg0: i32) -> (i32, i32) {
    %c0_i32 = arith.constant 0 : i32
    %c0_i32_0 = arith.constant 0 : i32
    %c0_i32_1 = arith.constant 0 : i32
    return %c0_i32, %c0_i32_0 : i32, i32
  }
  func.func @transform_10(%arg0: i32) -> (i32, i32) {
    %c0_i32 = arith.constant 0 : i32
    %c0_i32_0 = arith.constant 0 : i32
    %c0_i32_1 = arith.constant 0 : i32
    return %c0_i32, %c0_i32_0 : i32, i32
  }
  func.func @transform_11(%arg0: i32) -> (i32, i32) {
    %c0_i32 = arith.constant 0 : i32
    %c0_i32_0 = arith.constant 0 : i32
    %c0_i32_1 = arith.constant 0 : i32
    return %c0_i32, %c0_i32_0 : i32, i32
  }
  func.func @transform_12(%arg0: i32) -> (i32, i32) {
    %c0_i32 = arith.constant 0 : i32
    %c0_i32_0 = arith.constant 0 : i32
    %c0_i32_1 = arith.constant 0 : i32
    return %c0_i32, %c0_i32_0 : i32, i32
  }
  func.func @transform_13(%arg0: i32) -> (i32, i32) {
    %c0_i32 = arith.constant 0 : i32
    %c0_i32_0 = arith.constant 0 : i32
    return %c0_i32, %arg0 : i32, i32
  }
}

</mosaic_0001>

<llo_original>
// kernel: tpu_custom_call.1
$region0: #{tpu_custom_call.1}
  #allocation0 [shape = 'u32[]', space=smem, size = 0x4, offset = 0x4, fixed_abs, tag = 'smem constant byte address 0x4 - core index']
  #allocation1 [shape = 'u32[144,128]{1,0:T(1,128)}', space=vmem, size = 0x12000, scoped, tag = 'internal scratch']
  %s0 = inlined_call_operand.vmem [shape: f32[4,32], index: 0, kind: input, shape index: {}]
  %s1 = inlined_call_operand.vmem [shape: bf16[16,8], index: 1, kind: input, shape index: {}]
  %s2 = inlined_call_operand.vmem [shape: f32[16,1], index: 2, kind: input, shape index: {}]
  %s3 = inlined_call_operand.vmem [shape: bf16[8,16], index: 3, kind: input, shape index: {}]
  %s4 = inlined_call_operand.vmem [shape: f32[8,1], index: 4, kind: input, shape index: {}]
  %s5 = inlined_call_operand.vmem [shape: bf16[8,16], index: 5, kind: input, shape index: {}]
  %s6 = inlined_call_operand.vmem [shape: f32[8,1], index: 6, kind: input, shape index: {}]
  %s7 = inlined_call_operand.vmem [shape: bf16[8,16], index: 7, kind: input, shape index: {}]
  %s8 = inlined_call_operand.vmem [shape: f32[8,1], index: 8, kind: input, shape index: {}]
  %s9 = inlined_call_operand.vmem [shape: bf16[8,16], index: 9, kind: input, shape index: {}]
  %s10 = inlined_call_operand.vmem [shape: f32[8,1], index: 10, kind: input, shape index: {}]
  %s11 = inlined_call_operand.vmem [shape: bf16[8,16], index: 11, kind: input, shape index: {}]
  %s12 = inlined_call_operand.vmem [shape: f32[8,1], index: 12, kind: input, shape index: {}]
  %s13 = inlined_call_operand.hbm [shape: f32[8,32], index: 13, kind: output, shape index: {}]
  %s14 = sld [smem:[#allocation0]]
  $region62: #{tpu_custom_call.1} parent=0
    _
  %s16 = ssub.s32 1, %s14
  %s17 = scalar_select 0, %s16, %s14
  $region1: #{tpu_custom_call.1} parent=0
    #allocation2 [shape = 'u8[4096]{0}', space=vmem, size = 0x1000, scoped, tag = 'output window, operand 0, single buffered']
    #allocation3 [shape = 's32[1]{0}', space=sflag, size = 0x4, scoped, tag = 'scoped memory for tpu_custom_call.1']
    %18 = vsyncpa [#allocation3], 0
    // Predicated region
    $region2: #{tpu_custom_call.1} parent=1 // pred_check
      _
    $region3: #{tpu_custom_call.1} parent=1 // pred_check_branch
      %20 = sbr.rel (0) target = $region5
    $region4: #{tpu_custom_call.1} parent=1 // pred_region
      _
    $region5: #{tpu_custom_call.1} parent=1 // pred_fallthru
      _
    // Predicated region
    $region6: #{tpu_custom_call.1} parent=1 // pred_check
      _
    $region7: #{tpu_custom_call.1} parent=1 // pred_check_branch
      %22 = sbr.rel (0) target = $region9
    $region8: #{tpu_custom_call.1} parent=1 // pred_region
      _
    $region9: #{tpu_custom_call.1} parent=1 // pred_fallthru
      _
    // Predicated region
    $region10: #{tpu_custom_call.1} parent=1 // pred_check
      _
    $region11: #{tpu_custom_call.1} parent=1 // pred_check_branch
      %24 = sbr.rel (0) target = $region13
    $region12: #{tpu_custom_call.1} parent=1 // pred_region
      _
    $region13: #{tpu_custom_call.1} parent=1 // pred_fallthru
      _
    // Predicated region
    $region14: #{tpu_custom_call.1} parent=1 // pred_check
      _
    $region15: #{tpu_custom_call.1} parent=1 // pred_check_branch
      %26 = sbr.rel (0) target = $region17
    $region16: #{tpu_custom_call.1} parent=1 // pred_region
      _
    $region17: #{tpu_custom_call.1} parent=1 // pred_fallthru
      _
    // Predicated region
    $region18: #{tpu_custom_call.1} parent=1 // pred_check
      _
    $region19: #{tpu_custom_call.1} parent=1 // pred_check_branch
      %28 = sbr.rel (0) target = $region21
    $region20: #{tpu_custom_call.1} parent=1 // pred_region
      _
    $region21: #{tpu_custom_call.1} parent=1 // pred_fallthru
      _
    // Predicated region
    $region22: #{tpu_custom_call.1} parent=1 // pred_check
      _
    $region23: #{tpu_custom_call.1} parent=1 // pred_check_branch
      %30 = sbr.rel (0) target = $region25
    $region24: #{tpu_custom_call.1} parent=1 // pred_region
      _
    $region25: #{tpu_custom_call.1} parent=1 // pred_fallthru
      _
    // Predicated region
    $region26: #{tpu_custom_call.1} parent=1 // pred_check
      _
    $region27: #{tpu_custom_call.1} parent=1 // pred_check_branch
      %32 = sbr.rel (0) target = $region29
    $region28: #{tpu_custom_call.1} parent=1 // pred_region
      _
    $region29: #{tpu_custom_call.1} parent=1 // pred_fallthru
      _
    // Predicated region
    $region30: #{tpu_custom_call.1} parent=1 // pred_check
      _
    $region31: #{tpu_custom_call.1} parent=1 // pred_check_branch
      %34 = sbr.rel (0) target = $region33
    $region32: #{tpu_custom_call.1} parent=1 // pred_region
      _
    $region33: #{tpu_custom_call.1} parent=1 // pred_fallthru
      _
    // Predicated region
    $region34: #{tpu_custom_call.1} parent=1 // pred_check
      _
    $region35: #{tpu_custom_call.1} parent=1 // pred_check_branch
      %36 = sbr.rel (0) target = $region37
    $region36: #{tpu_custom_call.1} parent=1 // pred_region
      _
    $region37: #{tpu_custom_call.1} parent=1 // pred_fallthru
      _
    // Predicated region
    $region38: #{tpu_custom_call.1} parent=1 // pred_check
      _
    $region39: #{tpu_custom_call.1} parent=1 // pred_check_branch
      %38 = sbr.rel (0) target = $region41
    $region40: #{tpu_custom_call.1} parent=1 // pred_region
      _
    $region41: #{tpu_custom_call.1} parent=1 // pred_fallthru
      _
    // Predicated region
    $region42: #{tpu_custom_call.1} parent=1 // pred_check
      _
    $region43: #{tpu_custom_call.1} parent=1 // pred_check_branch
      %40 = sbr.rel (0) target = $region45
    $region44: #{tpu_custom_call.1} parent=1 // pred_region
      _
    $region45: #{tpu_custom_call.1} parent=1 // pred_fallthru
      _
    // Predicated region
    $region46: #{tpu_custom_call.1} parent=1 // pred_check
      _
    $region47: #{tpu_custom_call.1} parent=1 // pred_check_branch
      %42 = sbr.rel (0) target = $region49
    $region48: #{tpu_custom_call.1} parent=1 // pred_region
      _
    $region49: #{tpu_custom_call.1} parent=1 // pred_fallthru
      _
    // Predicated region
    $region50: #{tpu_custom_call.1} parent=1 // pred_check
      _
    $region51: #{tpu_custom_call.1} parent=1 // pred_check_branch
      %44 = sbr.rel (0) target = $region53
    $region52: #{tpu_custom_call.1} parent=1 // pred_region
      _
    $region53: #{tpu_custom_call.1} parent=1 // pred_fallthru
      _
    %v46 = vlaneseq
    %v47 = vand.u32 %v46, 127
    %48 = vrot.lane.b32.xlu0 %v47, 16
    %v49 = vpop.permute.xlu0 %48
    %vm50 = vcmask 130048
    %v51 = vsel %vm50, %v47, %v49
    %v52 = vld [vmem:[%s0] sm:$0xf]
    %v53 = vld [vmem:[%s1] sm:$0xf]
    %v54 = vld [vmem:[%s1 + $0x4] sm:$0xf]
    %v55 = vld [vmem:[%s2] sm:$0xff]
    %v56 = vld [vmem:[%s2 + $0x8] sm:$0xff]
    %v57 = vld [vmem:[%s3] sm:$0xf]
    %v58 = vld [vmem:[%s4] sm:$0xff]
    %v59 = vpack.c.bf16 %v52, %v52
    %61 = vrot.lane.b32.xlu0 %v59, 1
    %v62 = vpop.permute.xlu0 %61
    %vm63 = vcmask 7168
    %v66 = vsel %vm63, 0, %v62
    %vm68 = vcmp.ge.s32.totalorder %v51, 1
    %v69 = vsel %vm68, 1, 0
    %v70 = vlaneseq
    %v71 = vshrl.u32 %v70, 7
    %v72 = vsub.s32 0, %v71
    %v73 = vrot.slane %v69, %v72
    %vm74 = vcmp.eq.s32.totalorder %v73, 1
    %vm75 = vmpackc.low %vm74, %vm74
    %v76 = vsel %vm75, %v66, 0
    %v77 = vrot.slane %v59, 6
    %vm78 = vcmask 1041408
    %v81 = vsel %vm78, %v76, %v77
    %83 = vset.pattern.permute.xlu0 0
    %84 = vperm.xlu0 %83, %v55
    %v85 = vpop.permute.xlu0 %84
    %88 = vset.pattern.permute.xlu0 0
    %89 = vperm.xlu0 %88, %v56
    %v90 = vpop.permute.xlu0 %89
    %v94 = vunpack.c.l.b16 %v53
    %v95 = vunpack.c.l.b16 %v54
    %v96 = vpack.c.b16 %v95, %v94
    %vm97 = vcmask 64512
    %v99 = vsel %vm97, %v96, 0
    %vm101 = vcmask 1043456
    %v102 = vsel %vm101, %v81, 0
    %104 = vmatprep.subr.bf16.mxu0 0
    %105 = vmatpush1.bf16.msra.mxu0 0
    %106 = vmatprep.subr.bf16.mxu0 0
    %107 = vmatpush1.bf16.msra.mxu0 0
    %108 = vmatprep.subr.bf16.mxu0 0
    %109 = vmatpush1.bf16.msra.mxu0 0
    %110 = vmatprep.subr.bf16.mxu0 0
    %111 = vmatpush1.bf16.msra.mxu0 0
    %112 = vmatprep.subr.bf16.mxu0 0
    %113 = vmatpush1.bf16.msra.mxu0 0
    %114 = vmatprep.subr.bf16.mxu0 0
    %115 = vmatpush1.bf16.msra.mxu0 0
    %116 = vmatprep.subr.bf16.mxu0 0
    %117 = vmatpush1.bf16.msra.mxu0 0
    %118 = vmatprep.subr.bf16.mxu0 0
    %119 = vmatpush1.bf16.msra.mxu0 %v102
    %120 = vmatprep.subr.bf16.mxu0 0
    %121 = vmatpush2.bf16.msra.mxu0 0
    %122 = vmatprep.subr.bf16.mxu0 0
    %123 = vmatpush2.bf16.msra.mxu0 0
    %124 = vmatprep.subr.bf16.mxu0 0
    %125 = vmatpush2.bf16.msra.mxu0 0
    %126 = vmatprep.subr.bf16.mxu0 0
    %127 = vmatpush2.bf16.msra.mxu0 0
    %128 = vmatprep.subr.bf16.mxu0 0
    %129 = vmatpush2.bf16.msra.mxu0 0
    %130 = vmatprep.subr.bf16.mxu0 0
    %131 = vmatpush2.bf16.msra.mxu0 0
    %132 = vmatprep.subr.bf16.mxu0 0
    %133 = vmatpush2.bf16.msra.mxu0 0
    %134 = vmatprep.subr.bf16.mxu0 0
    %135 = vmatpush2.bf16.msra.mxu0 0
    %136 = vmatprep.mubr.bf16.mxu0 0
    %137 = vmatmul.mubr.bf16.gmra.mxu0 %v99
    %v138 = vpop.f32.mrf.mxu0
    %v139 = vadd.f32 %v85, %v138
    %v140 = vpop.f32.mrf.mxu0
    %v141 = vpop.f32.mrf.mxu0
    %v142 = vadd.f32 %v90, %v141
    %v143 = vpop.f32.mrf.mxu0
    %144 = vdwg.mxu0
    %v145 = vmax.f32 %v139, 0.0
    %v146 = vpack.c.bf16 %v145, %v145
    %148 = vrot.lane.b32.xlu0 %v146, 1
    %v149 = vpop.permute.xlu0 %148
    %v151 = vsel %vm63, 0, %v149
    %v153 = vsel %vm75, %v151, 0
    %v154 = vrot.slane %v146, 4
    %v157 = vsel %vm101, %v153, %v154
    %160 = vset.pattern.permute.xlu0 0
    %161 = vperm.xlu0 %160, %v58
    %v162 = vpop.permute.xlu0 %161
    %v165 = vsel %vm50, %v57, 0
    %167 = vmatprep.subr.bf16.mxu0 0
    %168 = vmatpush1.bf16.msra.mxu0 0
    %169 = vmatprep.subr.bf16.mxu0 0
    %170 = vmatpush1.bf16.msra.mxu0 0
    %171 = vmatprep.subr.bf16.mxu0 0
    %172 = vmatpush1.bf16.msra.mxu0 0
    %173 = vmatprep.subr.bf16.mxu0 0
    %174 = vmatpush1.bf16.msra.mxu0 0
    %175 = vmatprep.subr.bf16.mxu0 0
    %176 = vmatpush1.bf16.msra.mxu0 0
    %177 = vmatprep.subr.bf16.mxu0 0
    %178 = vmatpush1.bf16.msra.mxu0 0
    %179 = vmatprep.subr.bf16.mxu0 0
    %180 = vmatpush1.bf16.msra.mxu0 0
    %181 = vmatprep.subr.bf16.mxu0 0
    %182 = vmatpush1.bf16.msra.mxu0 %v157
    %183 = vmatprep.subr.bf16.mxu0 0
    %184 = vmatpush2.bf16.msra.mxu0 0
    %185 = vmatprep.subr.bf16.mxu0 0
    %186 = vmatpush2.bf16.msra.mxu0 0
    %187 = vmatprep.subr.bf16.mxu0 0
    %188 = vmatpush2.bf16.msra.mxu0 0
    %189 = vmatprep.subr.bf16.mxu0 0
    %190 = vmatpush2.bf16.msra.mxu0 0
    %191 = vmatprep.subr.bf16.mxu0 0
    %192 = vmatpush2.bf16.msra.mxu0 0
    %193 = vmatprep.subr.bf16.mxu0 0
    %194 = vmatpush2.bf16.msra.mxu0 0
    %195 = vmatprep.subr.bf16.mxu0 0
    %196 = vmatpush2.bf16.msra.mxu0 0
    %197 = vmatprep.subr.bf16.mxu0 0
    %198 = vmatpush2.bf16.msra.mxu0 0
    %199 = vmatprep.mubr.bf16.mxu0 0
    %200 = vmatmul.mubr.bf16.gmra.mxu0 %v165
    %v201 = vpop.f32.mrf.mxu0
    %v202 = vadd.f32 %v162, %v201
    %v203 = vpop.f32.mrf.mxu0
    %v204 = vpop.f32.mrf.mxu0
    %v205 = vpop.f32.mrf.mxu0
    %206 = vdwg.mxu0
    %v207 = vmax.f32 %v202, 0.0
    %v208 = vadd.f32 %v207, %v142
    %v209 = vmax.f32 %v208, 0.0
    %v210 = vld [vmem:[%s5] sm:$0xf]
    %v211 = vld [vmem:[%s6] sm:$0xff]
    %v212 = vld [vmem:[%s7] sm:$0xf]
    %v213 = vld [vmem:[%s8] sm:$0xff]
    %v214 = vpack.c.bf16 %v209, %v209
    %216 = vrot.lane.b32.xlu0 %v214, 2
    %v217 = vpop.permute.xlu0 %216
    %vm218 = vcmask 15360
    %v220 = vsel %vm218, 0, %v217
    %vm222 = vcmp.ge.s32.totalorder %v51, 2
    %v223 = vsel %vm222, 1, 0
    %v224 = vlaneseq
    %v225 = vshrl.u32 %v224, 7
    %v226 = vsub.s32 0, %v225
    %v227 = vrot.slane %v223, %v226
    %vm228 = vcmp.eq.s32.totalorder %v227, 1
    %vm229 = vmpackc.low %vm228, %vm228
    %v230 = vsel %vm229, %v220, 0
    %v231 = vrot.slane %v214, 4
    %v234 = vsel %vm101, %v230, %v231
    %237 = vset.pattern.permute.xlu0 0
    %238 = vperm.xlu0 %237, %v211
    %v239 = vpop.permute.xlu0 %238
    %v242 = vsel %vm50, %v210, 0
    %244 = vmatprep.subr.bf16.mxu0 0
    %245 = vmatpush1.bf16.msra.mxu0 0
    %246 = vmatprep.subr.bf16.mxu0 0
    %247 = vmatpush1.bf16.msra.mxu0 0
    %248 = vmatprep.subr.bf16.mxu0 0
    %249 = vmatpush1.bf16.msra.mxu0 0
    %250 = vmatprep.subr.bf16.mxu0 0
    %251 = vmatpush1.bf16.msra.mxu0 0
    %252 = vmatprep.subr.bf16.mxu0 0
    %253 = vmatpush1.bf16.msra.mxu0 0
    %254 = vmatprep.subr.bf16.mxu0 0
    %255 = vmatpush1.bf16.msra.mxu0 0
    %256 = vmatprep.subr.bf16.mxu0 0
    %257 = vmatpush1.bf16.msra.mxu0 0
    %258 = vmatprep.subr.bf16.mxu0 0
    %259 = vmatpush1.bf16.msra.mxu0 %v234
    %260 = vmatprep.subr.bf16.mxu0 0
    %261 = vmatpush2.bf16.msra.mxu0 0
    %262 = vmatprep.subr.bf16.mxu0 0
    %263 = vmatpush2.bf16.msra.mxu0 0
    %264 = vmatprep.subr.bf16.mxu0 0
    %265 = vmatpush2.bf16.msra.mxu0 0
    %266 = vmatprep.subr.bf16.mxu0 0
    %267 = vmatpush2.bf16.msra.mxu0 0
    %268 = vmatprep.subr.bf16.mxu0 0
    %269 = vmatpush2.bf16.msra.mxu0 0
    %270 = vmatprep.subr.bf16.mxu0 0
    %271 = vmatpush2.bf16.msra.mxu0 0
    %272 = vmatprep.subr.bf16.mxu0 0
    %273 = vmatpush2.bf16.msra.mxu0 0
    %274 = vmatprep.subr.bf16.mxu0 0
    %275 = vmatpush2.bf16.msra.mxu0 0
    %276 = vmatprep.mubr.bf16.mxu0 0
    %277 = vmatmul.mubr.bf16.gmra.mxu0 %v242
    %v278 = vpop.f32.mrf.mxu0
    %v279 = vadd.f32 %v239, %v278
    %v280 = vpop.f32.mrf.mxu0
    %v281 = vpop.f32.mrf.mxu0
    %v282 = vpop.f32.mrf.mxu0
    %283 = vdwg.mxu0
    %v284 = vmax.f32 %v279, 0.0
    %v285 = vunpack.c.l.bf16 %v214
    %v286 = vpack.c.bf16 %v284, %v284
    %288 = vrot.lane.b32.xlu0 %v286, 2
    %v289 = vpop.permute.xlu0 %288
    %v291 = vsel %vm218, 0, %v289
    %v293 = vsel %vm229, %v291, 0
    %v294 = vrot.slane %v286, 4
    %v297 = vsel %vm101, %v293, %v294
    %300 = vset.pattern.permute.xlu0 0
    %301 = vperm.xlu0 %300, %v213
    %v302 = vpop.permute.xlu0 %301
    %v305 = vsel %vm50, %v212, 0
    %307 = vmatprep.subr.bf16.mxu0 0
    %308 = vmatpush1.bf16.msra.mxu0 0
    %309 = vmatprep.subr.bf16.mxu0 0
    %310 = vmatpush1.bf16.msra.mxu0 0
    %311 = vmatprep.subr.bf16.mxu0 0
    %312 = vmatpush1.bf16.msra.mxu0 0
    %313 = vmatprep.subr.bf16.mxu0 0
    %314 = vmatpush1.bf16.msra.mxu0 0
    %315 = vmatprep.subr.bf16.mxu0 0
    %316 = vmatpush1.bf16.msra.mxu0 0
    %317 = vmatprep.subr.bf16.mxu0 0
    %318 = vmatpush1.bf16.msra.mxu0 0
    %319 = vmatprep.subr.bf16.mxu0 0
    %320 = vmatpush1.bf16.msra.mxu0 0
    %321 = vmatprep.subr.bf16.mxu0 0
    %322 = vmatpush1.bf16.msra.mxu0 %v297
    %323 = vmatprep.subr.bf16.mxu0 0
    %324 = vmatpush2.bf16.msra.mxu0 0
    %325 = vmatprep.subr.bf16.mxu0 0
    %326 = vmatpush2.bf16.msra.mxu0 0
    %327 = vmatprep.subr.bf16.mxu0 0
    %328 = vmatpush2.bf16.msra.mxu0 0
    %329 = vmatprep.subr.bf16.mxu0 0
    %330 = vmatpush2.bf16.msra.mxu0 0
    %331 = vmatprep.subr.bf16.mxu0 0
    %332 = vmatpush2.bf16.msra.mxu0 0
    %333 = vmatprep.subr.bf16.mxu0 0
    %334 = vmatpush2.bf16.msra.mxu0 0
    %335 = vmatprep.subr.bf16.mxu0 0
    %336 = vmatpush2.bf16.msra.mxu0 0
    %337 = vmatprep.subr.bf16.mxu0 0
    %338 = vmatpush2.bf16.msra.mxu0 0
    %339 = vmatprep.mubr.bf16.mxu0 0
    %340 = vmatmul.mubr.bf16.gmra.mxu0 %v305
    %v341 = vpop.f32.mrf.mxu0
    %v342 = vadd.f32 %v302, %v341
    %v343 = vpop.f32.mrf.mxu0
    %v344 = vpop.f32.mrf.mxu0
    %v345 = vpop.f32.mrf.mxu0
    %346 = vdwg.mxu0
    %v347 = vmax.f32 %v342, 0.0
    %v348 = vadd.f32 %v347, %v285
    %v349 = vmax.f32 %v348, 0.0
    %v350 = vld [vmem:[%s9] sm:$0xf]
    %v351 = vld [vmem:[%s10] sm:$0xff]
    %v352 = vld [vmem:[%s11] sm:$0xf]
    %v353 = vld [vmem:[%s12] sm:$0xff]
    %v354 = vpack.c.bf16 %v349, %v349
    %356 = vrot.lane.b32.xlu0 %v354, 4
    %v357 = vpop.permute.xlu0 %356
    %vm358 = vcmask 31744
    %v360 = vsel %vm358, 0, %v357
    %vm362 = vcmp.ge.s32.totalorder %v51, 4
    %v363 = vsel %vm362, 1, 0
    %v364 = vlaneseq
    %v365 = vshrl.u32 %v364, 7
    %v366 = vsub.s32 0, %v365
    %v367 = vrot.slane %v363, %v366
    %vm368 = vcmp.eq.s32.totalorder %v367, 1
    %vm369 = vmpackc.low %vm368, %vm368
    %v370 = vsel %vm369, %v360, 0
    %v371 = vrot.slane %v354, 4
    %v374 = vsel %vm101, %v370, %v371
    %377 = vset.pattern.permute.xlu0 0
    %378 = vperm.xlu0 %377, %v351
    %v379 = vpop.permute.xlu0 %378
    %v382 = vsel %vm50, %v350, 0
    %384 = vmatprep.subr.bf16.mxu0 0
    %385 = vmatpush1.bf16.msra.mxu0 0
    %386 = vmatprep.subr.bf16.mxu0 0
    %387 = vmatpush1.bf16.msra.mxu0 0
    %388 = vmatprep.subr.bf16.mxu0 0
    %389 = vmatpush1.bf16.msra.mxu0 0
    %390 = vmatprep.subr.bf16.mxu0 0
    %391 = vmatpush1.bf16.msra.mxu0 0
    %392 = vmatprep.subr.bf16.mxu0 0
    %393 = vmatpush1.bf16.msra.mxu0 0
    %394 = vmatprep.subr.bf16.mxu0 0
    %395 = vmatpush1.bf16.msra.mxu0 0
    %396 = vmatprep.subr.bf16.mxu0 0
    %397 = vmatpush1.bf16.msra.mxu0 0
    %398 = vmatprep.subr.bf16.mxu0 0
    %399 = vmatpush1.bf16.msra.mxu0 %v374
    %400 = vmatprep.subr.bf16.mxu0 0
    %401 = vmatpush2.bf16.msra.mxu0 0
    %402 = vmatprep.subr.bf16.mxu0 0
    %403 = vmatpush2.bf16.msra.mxu0 0
    %404 = vmatprep.subr.bf16.mxu0 0
    %405 = vmatpush2.bf16.msra.mxu0 0
    %406 = vmatprep.subr.bf16.mxu0 0
    %407 = vmatpush2.bf16.msra.mxu0 0
    %408 = vmatprep.subr.bf16.mxu0 0
    %409 = vmatpush2.bf16.msra.mxu0 0
    %410 = vmatprep.subr.bf16.mxu0 0
    %411 = vmatpush2.bf16.msra.mxu0 0
    %412 = vmatprep.subr.bf16.mxu0 0
    %413 = vmatpush2.bf16.msra.mxu0 0
    %414 = vmatprep.subr.bf16.mxu0 0
    %415 = vmatpush2.bf16.msra.mxu0 0
    %416 = vmatprep.mubr.bf16.mxu0 0
    %417 = vmatmul.mubr.bf16.gmra.mxu0 %v382
    %v418 = vpop.f32.mrf.mxu0
    %v419 = vadd.f32 %v379, %v418
    %v420 = vpop.f32.mrf.mxu0
    %v421 = vpop.f32.mrf.mxu0
    %v422 = vpop.f32.mrf.mxu0
    %423 = vdwg.mxu0
    %v424 = vmax.f32 %v419, 0.0
    %v425 = vunpack.c.l.bf16 %v354
    %v426 = vpack.c.bf16 %v424, %v424
    %428 = vrot.lane.b32.xlu0 %v426, 4
    %v429 = vpop.permute.xlu0 %428
    %v431 = vsel %vm358, 0, %v429
    %v433 = vsel %vm369, %v431, 0
    %v434 = vrot.slane %v426, 4
    %v437 = vsel %vm101, %v433, %v434
    %440 = vset.pattern.permute.xlu0 0
    %441 = vperm.xlu0 %440, %v353
    %v442 = vpop.permute.xlu0 %441
    %v445 = vsel %vm50, %v352, 0
    %447 = vmatprep.subr.bf16.mxu0 0
    %448 = vmatpush1.bf16.msra.mxu0 0
    %449 = vmatprep.subr.bf16.mxu0 0
    %450 = vmatpush1.bf16.msra.mxu0 0
    %451 = vmatprep.subr.bf16.mxu0 0
    %452 = vmatpush1.bf16.msra.mxu0 0
    %453 = vmatprep.subr.bf16.mxu0 0
    %454 = vmatpush1.bf16.msra.mxu0 0
    %455 = vmatprep.subr.bf16.mxu0 0
    %456 = vmatpush1.bf16.msra.mxu0 0
    %457 = vmatprep.subr.bf16.mxu0 0
    %458 = vmatpush1.bf16.msra.mxu0 0
    %459 = vmatprep.subr.bf16.mxu0 0
    %460 = vmatpush1.bf16.msra.mxu0 0
    %461 = vmatprep.subr.bf16.mxu0 0
    %462 = vmatpush1.bf16.msra.mxu0 %v437
    %463 = vmatprep.subr.bf16.mxu0 0
    %464 = vmatpush2.bf16.msra.mxu0 0
    %465 = vmatprep.subr.bf16.mxu0 0
    %466 = vmatpush2.bf16.msra.mxu0 0
    %467 = vmatprep.subr.bf16.mxu0 0
    %468 = vmatpush2.bf16.msra.mxu0 0
    %469 = vmatprep.subr.bf16.mxu0 0
    %470 = vmatpush2.bf16.msra.mxu0 0
    %471 = vmatprep.subr.bf16.mxu0 0
    %472 = vmatpush2.bf16.msra.mxu0 0
    %473 = vmatprep.subr.bf16.mxu0 0
    %474 = vmatpush2.bf16.msra.mxu0 0
    %475 = vmatprep.subr.bf16.mxu0 0
    %476 = vmatpush2.bf16.msra.mxu0 0
    %477 = vmatprep.subr.bf16.mxu0 0
    %478 = vmatpush2.bf16.msra.mxu0 0
    %479 = vmatprep.mubr.bf16.mxu0 0
    %480 = vmatmul.mubr.bf16.gmra.mxu0 %v445
    %v481 = vpop.f32.mrf.mxu0
    %v482 = vadd.f32 %v442, %v481
    %v483 = vpop.f32.mrf.mxu0
    %v484 = vpop.f32.mrf.mxu0
    %v485 = vpop.f32.mrf.mxu0
    %486 = vdwg.mxu0
    %v487 = vmax.f32 %v482, 0.0
    %v488 = vadd.f32 %v487, %v425
    %v489 = vmax.f32 %v488, 0.0
    %vm490 = vcmask 261120
    %491 = vst.msk [vmem:[#allocation2] sm:$0xff] %vm490, %v489
    // Predicated region
    $region54: #{tpu_custom_call.1} parent=1 // pred_check
      _
    $region55: #{tpu_custom_call.1} parent=1 // pred_check_branch
      %493 = sbr.rel (0) target = $region57
    $region56: #{tpu_custom_call.1} parent=1 // pred_region
      %s495 = ssub.s32 128, 128
      %496 = vsyncadd [#allocation3], %s495
      %s498 = sshll.u32 [#allocation2], 4
      %s499 = int_to_ptr.vmem [resolvable:$true] %s498
      %501 = dma.vmem_to_hbm [thread:$0]  %s499, 128, %s13, [#allocation3]
    $region57: #{tpu_custom_call.1} parent=1 // pred_fallthru
      _
    // Predicated region
    $region58: #{tpu_custom_call.1} parent=1 // pred_check
      _
    $region59: #{tpu_custom_call.1} parent=1 // pred_check_branch
      %503 = sbr.rel (0) target = $region61
    $region60: #{tpu_custom_call.1} parent=1 // pred_region
      %504 = dma.done [#allocation3], 128
    $region61: #{tpu_custom_call.1} parent=1 // pred_fallthru
      _
    %505 = vsyncpa [#allocation3], 1

</llo_original>
